<compile_context>
chip_gen: v5e
topology: v5e:2x2
jax: 0.10.0
libtpu: 0.0.40
codegen_flags: <defaults>
</compile_context>

<pallas_src>
import numpy as np
import jax
import jax.numpy as jnp
from jax import lax
from jax.experimental import pallas as pl
from jax.experimental.pallas import tpu as pltpu

HIGHEST = lax.Precision.HIGHEST


def _round_up(x, m):
    return (x + m - 1) // m * m


def _make_kernel(T, TB, Cin, C1, C2, H, OD):
    """One grid step = TB batch elements; activation rows are time-major."""
    T2, T4 = T // 2, T // 4
    rows2 = TB * T2

    def kernel(xt_ref, w1_ref, b1_ref, w2_ref, b2_ref,
               fw1_ref, fb1_ref, fw2_ref, fb2_ref,
               out_ref, p1_ref):
        # ---- conv1 (im2col precomputed in the wrapper) + bias + relu -------
        h1 = jnp.dot(xt_ref[...], w1_ref[...],
                     preferred_element_type=jnp.float32) + b1_ref[...]
        h1 = jnp.maximum(h1, 0.0)                        # (rows1, C1) f32

        # ---- maxpool1: time-major rows -> contiguous TB-row block maxima ---
        h1r = h1.reshape(T2, 2 * TB, C1)
        p1 = jnp.maximum(h1r[:, :TB, :], h1r[:, TB:, :]).astype(jnp.bfloat16)

        # Stage pool1 output once in a zero-padded bf16 scratch so the conv2
        # taps are plain contiguous offset reads.  The pad blocks are tiny and
        # rewritten every step so correctness never depends on scratch state
        # (safe when the parallel grid axis is sharded across TensorCores).
        zero_blk = jnp.zeros((1, TB, C1), jnp.bfloat16)
        p1_ref[0:1, :, :] = zero_blk
        p1_ref[T2 + 1:T2 + 2, :, :] = zero_blk
        p1_ref[pl.ds(1, T2), :, :] = p1

        # ---- conv2 (k=3, pad=1) as 3 accumulated matmuls + bias + relu -----
        h2 = b2_ref[...]                                 # (1, C2) f32
        for k in range(3):                               # static, 3 taps
            tap = p1_ref[pl.ds(k, T2), :, :].reshape(rows2, C1)
            h2 = h2 + jnp.dot(tap, w2_ref[k],
                              preferred_element_type=jnp.float32)
        h2 = jnp.maximum(h2, 0.0)                        # (rows2, C2) f32

        # ---- maxpool2 fused with flatten + fc1: per pooled time step one
        #      contiguous (TB, C2) block max -> accumulated (TB,C2)x(C2,H)
        #      matmul (fc1 weight pre-permuted to time-major in the wrapper) --
        h2r = h2.reshape(T4, 2 * TB, C2)
        z = fb1_ref[...]                                 # (1, H) f32
        for t in range(T4):                              # static; T4 is small
            p2_t = jnp.maximum(h2r[t, :TB, :],
                               h2r[t, TB:, :]).astype(jnp.bfloat16)
            z = z + jnp.dot(p2_t, fw1_ref[t],
                            preferred_element_type=jnp.float32)
        z = jnp.maximum(z, 0.0).astype(jnp.bfloat16)     # (TB, H)
        # TODO(synk): nn.Dropout(0.2) is identity in eval mode; training-mode
        # RNG mask (pltpu.prng_seed / prng_random_bits) not implemented.

        # ---- fc2: lane-dense (OD, TB) output (A @ B^T contraction) ---------
        out = lax.dot_general(fw2_ref[...], z, (((1,), (1,)), ((), ())),
                              preferred_element_type=jnp.float32)
        out_ref[...] = out + fb2_ref[...]

    return kernel


def cnn1d_forward(x_ncl, params, block_b=256):
    """Forward pass. x_ncl: (B, Cin, T) float32; params in PyTorch layouts.

    Returns (B, output_dim) float32.
    """
    w1, b1, w2, b2, fw1, fb1, fw2, fb2 = params
    B, Cin, T = x_ncl.shape
    assert T % 4 == 0, "n_time_steps must be divisible by 4 (two MaxPool1d(2))"
    T2, T4 = T // 2, T // 4
    C1 = w1.shape[0]                  # 32
    C2 = w2.shape[0]                  # 64
    H = fw1.shape[0]                  # 64
    out_dim = fw2.shape[0]            # 1
    OD = _round_up(out_dim, 8)        # sublane-pad fc2 rows -> lane-dense store

    # ---- batch tile: multiple of 8, >=2 grid steps when possible (v7x two
    #      TensorCores), and TB*T capped so per-step VMEM stays small ---------
    TB = min(_round_up(block_b, 8), _round_up(max(1, (B + 1) // 2), 8))
    max_rows = 16384                  # VMEM guard (fits v5e 16 MiB scoped / v7x 64 MiB)
    if TB * T > max_rows:
        TB = max(8, (max_rows // T) // 8 * 8)
    B_pad = _round_up(B, TB)
    G = B_pad // TB
    rows1 = TB * T

    # ---- wrapper-side im2col for conv1, time-major rows (row = t*TB + b) ----
    x_btc = jnp.transpose(x_ncl, (0, 2, 1)).astype(jnp.float32)      # (B, T, Cin)
    if B_pad != B:
        x_btc = jnp.pad(x_btc, ((0, B_pad - B), (0, 0), (0, 0)))
    x_g = x_btc.reshape(G, TB, T, Cin).transpose(0, 2, 1, 3)          # (G, T, TB, Cin)
    xp = jnp.pad(x_g, ((0, 0), (1, 1), (0, 0), (0, 0)))               # "same" zero pad
    x_taps = jnp.concatenate([xp[:, 0:T], xp[:, 1:T + 1], xp[:, 2:T + 2]],
                             axis=-1)                                 # (G, T, TB, 3*Cin)
    x_taps = x_taps.reshape(G, rows1, 3 * Cin).astype(jnp.bfloat16)

    # ---- weights pre-laid-out so each layer is a resident-weight matmul -----
    w1c = jnp.transpose(w1, (2, 1, 0)).reshape(3 * Cin, C1).astype(jnp.bfloat16)
    w2k = jnp.transpose(w2, (2, 1, 0)).astype(jnp.bfloat16)           # (3, C1, C2)
    # fc1: PyTorch flattens (channel, time); kernel accumulates per time step.
    fw1r = jnp.transpose(fw1.reshape(H, C2, T4), (2, 1, 0)).astype(jnp.bfloat16)  # (T4, C2, H)
    fw2p = jnp.pad(fw2, ((0, OD - out_dim), (0, 0))).astype(jnp.bfloat16)          # (OD, H)
    b1r = b1.reshape(1, C1).astype(jnp.float32)
    b2r = b2.reshape(1, C2).astype(jnp.float32)
    fb1r = fb1.reshape(1, H).astype(jnp.float32)
    fb2p = jnp.pad(fb2.reshape(out_dim, 1),
                   ((0, OD - out_dim), (0, 0))).astype(jnp.float32)   # (OD, 1)

    def res2(a):   # resident 2-D weight: same block every grid step
        return pl.BlockSpec(a.shape, lambda i: (0, 0))

    def res3(a):   # resident 3-D weight
        return pl.BlockSpec(a.shape, lambda i: (0, 0, 0))

    flops = 2 * B_pad * (T * 3 * Cin * C1 + T2 * 3 * C1 * C2 + T4 * C2 * H + H * OD)
    bytes_accessed = (int(x_taps.size) * 2 + G * OD * TB * 4
                      + (int(w1c.size) + int(w2k.size) + int(fw1r.size) + int(fw2p.size)) * 2
                      + (int(b1r.size) + int(b2r.size) + int(fb1r.size) + int(fb2p.size)) * 4)

    out = pl.pallas_call(
        _make_kernel(T, TB, Cin, C1, C2, H, OD),
        out_shape=jax.ShapeDtypeStruct((G, OD, TB), jnp.float32),
        grid=(G,),
        in_specs=[
            pl.BlockSpec((None, rows1, 3 * Cin), lambda i: (i, 0, 0)),
            res2(w1c), res2(b1r), res3(w2k), res2(b2r),
            res3(fw1r), res2(fb1r), res2(fw2p), res2(fb2p),
        ],
        out_specs=pl.BlockSpec((None, OD, TB), lambda i: (i, 0, 0)),
        scratch_shapes=[
            pltpu.VMEM((T2 + 2, TB, C1), jnp.bfloat16),   # zero-padded pool1 output
        ],
        compiler_params=pltpu.CompilerParams(
            dimension_semantics=("parallel",),
            vmem_limit_bytes=32 * 1024 * 1024),
        cost_estimate=pl.CostEstimate(flops=int(flops), transcendentals=0,
                                      bytes_accessed=int(bytes_accessed)),
    )(x_taps, w1c, b1r, w2k, b2r, fw1r, fb1r, fw2p, fb2p)

    out = jnp.transpose(out[:, :out_dim, :], (0, 2, 1)).reshape(B_pad, out_dim)
    return out[:B]


def cnn1d_reference(x_ncl, params):
    """Pure-JAX f32 reference mirroring the PyTorch module (eval mode)."""
    w1, b1, w2, b2, fw1, fb1, fw2, fb2 = params
    x = x_ncl.astype(jnp.float32)
    y = lax.conv_general_dilated(x, w1.astype(jnp.float32), (1,), ((1, 1),),
                                 dimension_numbers=("NCH", "OIH", "NCH"),
                                 precision=HIGHEST)
    y = jax.nn.relu(y + b1[None, :, None])
    y = lax.reduce_window(y, -jnp.inf, lax.max, (1, 1, 2), (1, 1, 2), "VALID")
    y = lax.conv_general_dilated(y, w2.astype(jnp.float32), (1,), ((1, 1),),
                                 dimension_numbers=("NCH", "OIH", "NCH"),
                                 precision=HIGHEST)
    y = jax.nn.relu(y + b2[None, :, None])
    y = lax.reduce_window(y, -jnp.inf, lax.max, (1, 1, 2), (1, 1, 2), "VALID")
    f = y.reshape(y.shape[0], -1)                      # channel-major flatten
    z = jax.nn.relu(jnp.dot(f, fw1.T, precision=HIGHEST) + fb1)
    return jnp.dot(z, fw2.T, precision=HIGHEST) + fb2


if __name__ == "__main__":
    key = jax.random.PRNGKey(0)
    B, Cin, T = 2, 4, 16            # n_time_steps = 16 -> final_time_dim = 4
    T4 = T // 4
    ks = jax.random.split(key, 10)
    params = (
        0.1 * jax.random.normal(ks[1], (32, Cin, 3), dtype=jnp.float32),   # conv1.weight
        0.1 * jax.random.normal(ks[2], (32,), dtype=jnp.float32),          # conv1.bias
        0.1 * jax.random.normal(ks[3], (64, 32, 3), dtype=jnp.float32),    # conv2.weight
        0.1 * jax.random.normal(ks[4], (64,), dtype=jnp.float32),          # conv2.bias
        0.1 * jax.random.normal(ks[5], (64, 64 * T4), dtype=jnp.float32),  # fc1.weight
        0.1 * jax.random.normal(ks[6], (64,), dtype=jnp.float32),          # fc1.bias
        0.1 * jax.random.normal(ks[7], (1, 64), dtype=jnp.float32),        # fc2.weight
        0.1 * jax.random.normal(ks[8], (1,), dtype=jnp.float32),           # fc2.bias
    )

    # tolerance: kernel matmuls use bf16 operands (f32 accumulation) vs an
    # f32 HIGHEST-precision reference.
    rtol = atol = 3e-2

    # single-grid-step case
    x_small = jax.random.normal(ks[0], (B, Cin, T), dtype=jnp.float32)
    out_small = jax.block_until_ready(cnn1d_forward(x_small, params))
    assert out_small.shape == (B, 1)
    np.testing.assert_allclose(np.asarray(out_small),
                               np.asarray(cnn1d_reference(x_small, params)),
                               rtol=rtol, atol=atol)

    # multi-block grid with batch padding (exercises the pipelined grid path)
    x_big = jax.random.normal(ks[9], (20, Cin, T), dtype=jnp.float32)
    out_big = jax.block_until_ready(cnn1d_forward(x_big, params, block_b=8))
    assert out_big.shape == (20, 1)
    np.testing.assert_allclose(np.asarray(out_big),
                               np.asarray(cnn1d_reference(x_big, params)),
                               rtol=rtol, atol=atol)

    print("KERNEL_OK")
</pallas_src>

<mosaic_0001>
module attributes {stable_mosaic.version = 11 : i64} {
  func.func @kernel(%arg0: i32, %arg1: memref<1x128x12xbf16, #tpu.memory_space<vmem>>, %arg2: memref<12x32xbf16, #tpu.memory_space<vmem>>, %arg3: memref<1x32xf32, #tpu.memory_space<vmem>>, %arg4: memref<3x32x64xbf16, #tpu.memory_space<vmem>>, %arg5: memref<1x64xf32, #tpu.memory_space<vmem>>, %arg6: memref<4x64x64xbf16, #tpu.memory_space<vmem>>, %arg7: memref<1x64xf32, #tpu.memory_space<vmem>>, %arg8: memref<8x64xbf16, #tpu.memory_space<vmem>>, %arg9: memref<8x1xf32, #tpu.memory_space<vmem>>, %arg10: memref<1x8x8xf32, #tpu.memory_space<vmem>>, %arg11: memref<10x8x32xbf16, #tpu.memory_space<vmem>>) attributes {dimension_semantics = [#tpu.dimension_semantics<parallel>], iteration_bounds = array<i64: 1>, scalar_prefetch = 0 : i64, scratch_operands = 1 : i64, tpu.core_type = #tpu.core_type<tc>, window_params = [{transform_indices = @transform_0, window_bounds = array<i64: 1, 128, 12>}, {pipeline_mode = #tpu.pipeline_mode<synchronous>, transform_indices = @transform_1, window_bounds = array<i64: 12, 32>}, {pipeline_mode = #tpu.pipeline_mode<synchronous>, transform_indices = @transform_2, window_bounds = array<i64: 1, 32>}, {pipeline_mode = #tpu.pipeline_mode<synchronous>, transform_indices = @transform_3, window_bounds = array<i64: 3, 32, 64>}, {pipeline_mode = #tpu.pipeline_mode<synchronous>, transform_indices = @transform_4, window_bounds = array<i64: 1, 64>}, {pipeline_mode = #tpu.pipeline_mode<synchronous>, transform_indices = @transform_5, window_bounds = array<i64: 4, 64, 64>}, {pipeline_mode = #tpu.pipeline_mode<synchronous>, transform_indices = @transform_6, window_bounds = array<i64: 1, 64>}, {pipeline_mode = #tpu.pipeline_mode<synchronous>, transform_indices = @transform_7, window_bounds = array<i64: 8, 64>}, {pipeline_mode = #tpu.pipeline_mode<synchronous>, transform_indices = @transform_8, window_bounds = array<i64: 8, 1>}, {transform_indices = @transform_9, window_bounds = array<i64: 1, 8, 8>}]} {
    %c0 = arith.constant 0 : index
    %c0_0 = arith.constant 0 : index
    %c0_1 = arith.constant 0 : index
    %0 = vector.load %arg1[%c0, %c0_0, %c0_1] : memref<1x128x12xbf16, #tpu.memory_space<vmem>>, vector<1x128x12xbf16>
    %1 = vector.shape_cast %0 : vector<1x128x12xbf16> to vector<128x12xbf16>
    %c0_2 = arith.constant 0 : index
    %c0_3 = arith.constant 0 : index
    %2 = vector.load %arg2[%c0_2, %c0_3] : memref<12x32xbf16, #tpu.memory_space<vmem>>, vector<12x32xbf16>
    %cst = arith.constant dense<0.000000e+00> : vector<128x32xf32>
    %3 = tpu.matmul %1, %2, %cst {dimension_numbers = #tpu.dot_dimension_numbers<[1], [0], [0], [1], [0, 0, 1, 1], [], []>} : vector<128x12xbf16>, vector<12x32xbf16>, vector<128x32xf32> -> vector<128x32xf32>
    %c0_4 = arith.constant 0 : index
    %c0_5 = arith.constant 0 : index
    %4 = vector.load %arg3[%c0_4, %c0_5] : memref<1x32xf32, #tpu.memory_space<vmem>>, vector<1x32xf32>
    %5 = vector.broadcast %4 : vector<1x32xf32> to vector<128x32xf32>
    %6 = arith.addf %3, %5 : vector<128x32xf32>
    %cst_6 = arith.constant 0.000000e+00 : f32
    %7 = vector.broadcast %cst_6 : f32 to vector<128x32xf32>
    %8 = arith.maximumf %6, %7 : vector<128x32xf32>
    %9 = vector.shape_cast %8 : vector<128x32xf32> to vector<8x16x32xf32>
    %10 = vector.extract_strided_slice %9 {offsets = [0, 0, 0], sizes = [8, 8, 32], strides = [1, 1, 1]} : vector<8x16x32xf32> to vector<8x8x32xf32>
    %11 = vector.extract_strided_slice %9 {offsets = [0, 8, 0], sizes = [8, 8, 32], strides = [1, 1, 1]} : vector<8x16x32xf32> to vector<8x8x32xf32>
    %12 = arith.maximumf %10, %11 : vector<8x8x32xf32>
    %13 = arith.truncf %12 : vector<8x8x32xf32> to vector<8x8x32xbf16>
    %cst_7 = arith.constant 0.000000e+00 : bf16
    %14 = vector.broadcast %cst_7 : bf16 to vector<1x8x32xbf16>
    %c0_8 = arith.constant 0 : index
    %c0_9 = arith.constant 0 : index
    %c0_10 = arith.constant 0 : index
    %15 = vector.load %arg11[%c0_8, %c0_9, %c0_10] : memref<10x8x32xbf16, #tpu.memory_space<vmem>>, vector<1x8x32xbf16>
    tpu.vector_store %arg11[%c0_8, %c0_9, %c0_10], %14 {strides = array<i32>} : memref<10x8x32xbf16, #tpu.memory_space<vmem>>, vector<1x8x32xbf16>,
    %c9 = arith.constant 9 : index
    %c0_11 = arith.constant 0 : index
    %c0_12 = arith.constant 0 : index
    %16 = vector.load %arg11[%c9, %c0_11, %c0_12] : memref<10x8x32xbf16, #tpu.memory_space<vmem>>, vector<1x8x32xbf16>
    tpu.vector_store %arg11[%c9, %c0_11, %c0_12], %14 {strides = array<i32>} : memref<10x8x32xbf16, #tpu.memory_space<vmem>>, vector<1x8x32xbf16>,
    %c1 = arith.constant 1 : index
    %c0_13 = arith.constant 0 : index
    %c0_14 = arith.constant 0 : index
    %17 = vector.load %arg11[%c1, %c0_13, %c0_14] : memref<10x8x32xbf16, #tpu.memory_space<vmem>>, vector<8x8x32xbf16>
    tpu.vector_store %arg11[%c1, %c0_13, %c0_14], %13 {strides = array<i32>} : memref<10x8x32xbf16, #tpu.memory_space<vmem>>, vector<8x8x32xbf16>,
    %c0_15 = arith.constant 0 : index
    %c0_16 = arith.constant 0 : index
    %18 = vector.load %arg5[%c0_15, %c0_16] : memref<1x64xf32, #tpu.memory_space<vmem>>, vector<1x64xf32>
    %c0_17 = arith.constant 0 : index
    %c0_18 = arith.constant 0 : index
    %c0_19 = arith.constant 0 : index
    %19 = vector.load %arg11[%c0_17, %c0_18, %c0_19] : memref<10x8x32xbf16, #tpu.memory_space<vmem>>, vector<8x8x32xbf16>
    %20 = vector.shape_cast %19 : vector<8x8x32xbf16> to vector<64x32xbf16>
    %c0_20 = arith.constant 0 : index
    %c0_21 = arith.constant 0 : index
    %c0_22 = arith.constant 0 : index
    %21 = vector.load %arg4[%c0_20, %c0_21, %c0_22] : memref<3x32x64xbf16, #tpu.memory_space<vmem>>, vector<1x32x64xbf16>
    %22 = vector.shape_cast %21 : vector<1x32x64xbf16> to vector<32x64xbf16>
    %cst_23 = arith.constant dense<0.000000e+00> : vector<64x64xf32>
    %23 = tpu.matmul %20, %22, %cst_23 {dimension_numbers = #tpu.dot_dimension_numbers<[1], [0], [0], [1], [0, 0, 1, 1], [], []>} : vector<64x32xbf16>, vector<32x64xbf16>, vector<64x64xf32> -> vector<64x64xf32>
    %24 = vector.broadcast %18 : vector<1x64xf32> to vector<64x64xf32>
    %25 = arith.addf %24, %23 : vector<64x64xf32>
    %c1_24 = arith.constant 1 : index
    %c0_25 = arith.constant 0 : index
    %c0_26 = arith.constant 0 : index
    %26 = vector.load %arg11[%c1_24, %c0_25, %c0_26] : memref<10x8x32xbf16, #tpu.memory_space<vmem>>, vector<8x8x32xbf16>
    %27 = vector.shape_cast %26 : vector<8x8x32xbf16> to vector<64x32xbf16>
    %c1_27 = arith.constant 1 : index
    %c0_28 = arith.constant 0 : index
    %c0_29 = arith.constant 0 : index
    %28 = vector.load %arg4[%c1_27, %c0_28, %c0_29] : memref<3x32x64xbf16, #tpu.memory_space<vmem>>, vector<1x32x64xbf16>
    %29 = vector.shape_cast %28 : vector<1x32x64xbf16> to vector<32x64xbf16>
    %cst_30 = arith.constant dense<0.000000e+00> : vector<64x64xf32>
    %30 = tpu.matmul %27, %29, %cst_30 {dimension_numbers = #tpu.dot_dimension_numbers<[1], [0], [0], [1], [0, 0, 1, 1], [], []>} : vector<64x32xbf16>, vector<32x64xbf16>, vector<64x64xf32> -> vector<64x64xf32>
    %31 = arith.addf %25, %30 : vector<64x64xf32>
    %c2 = arith.constant 2 : index
    %c0_31 = arith.constant 0 : index
    %c0_32 = arith.constant 0 : index
    %32 = vector.load %arg11[%c2, %c0_31, %c0_32] : memref<10x8x32xbf16, #tpu.memory_space<vmem>>, vector<8x8x32xbf16>
    %33 = vector.shape_cast %32 : vector<8x8x32xbf16> to vector<64x32xbf16>
    %c2_33 = arith.constant 2 : index
    %c0_34 = arith.constant 0 : index
    %c0_35 = arith.constant 0 : index
    %34 = vector.load %arg4[%c2_33, %c0_34, %c0_35] : memref<3x32x64xbf16, #tpu.memory_space<vmem>>, vector<1x32x64xbf16>
    %35 = vector.shape_cast %34 : vector<1x32x64xbf16> to vector<32x64xbf16>
    %cst_36 = arith.constant dense<0.000000e+00> : vector<64x64xf32>
    %36 = tpu.matmul %33, %35, %cst_36 {dimension_numbers = #tpu.dot_dimension_numbers<[1], [0], [0], [1], [0, 0, 1, 1], [], []>} : vector<64x32xbf16>, vector<32x64xbf16>, vector<64x64xf32> -> vector<64x64xf32>
    %37 = arith.addf %31, %36 : vector<64x64xf32>
    %cst_37 = arith.constant 0.000000e+00 : f32
    %38 = vector.broadcast %cst_37 : f32 to vector<64x64xf32>
    %39 = arith.maximumf %37, %38 : vector<64x64xf32>
    %40 = vector.shape_cast %39 : vector<64x64xf32> to vector<4x16x64xf32>
    %c0_38 = arith.constant 0 : index
    %c0_39 = arith.constant 0 : index
    %41 = vector.load %arg7[%c0_38, %c0_39] : memref<1x64xf32, #tpu.memory_space<vmem>>, vector<1x64xf32>
    %42 = vector.extract_strided_slice %40 {offsets = [0, 0, 0], sizes = [1, 8, 64], strides = [1, 1, 1]} : vector<4x16x64xf32> to vector<1x8x64xf32>
    %43 = vector.shape_cast %42 : vector<1x8x64xf32> to vector<8x64xf32>
    %44 = vector.extract_strided_slice %40 {offsets = [0, 8, 0], sizes = [1, 8, 64], strides = [1, 1, 1]} : vector<4x16x64xf32> to vector<1x8x64xf32>
    %45 = vector.shape_cast %44 : vector<1x8x64xf32> to vector<8x64xf32>
    %46 = arith.maximumf %43, %45 : vector<8x64xf32>
    %47 = arith.truncf %46 : vector<8x64xf32> to vector<8x64xbf16>
    %c0_40 = arith.constant 0 : index
    %c0_41 = arith.constant 0 : index
    %c0_42 = arith.constant 0 : index
    %48 = vector.load %arg6[%c0_40, %c0_41, %c0_42] : memref<4x64x64xbf16, #tpu.memory_space<vmem>>, vector<1x64x64xbf16>
    %49 = vector.shape_cast %48 : vector<1x64x64xbf16> to vector<64x64xbf16>
    %cst_43 = arith.constant dense<0.000000e+00> : vector<8x64xf32>
    %50 = tpu.matmul %47, %49, %cst_43 {dimension_numbers = #tpu.dot_dimension_numbers<[1], [0], [0], [1], [0, 0, 1, 1], [], []>} : vector<8x64xbf16>, vector<64x64xbf16>, vector<8x64xf32> -> vector<8x64xf32>
    %51 = vector.broadcast %41 : vector<1x64xf32> to vector<8x64xf32>
    %52 = arith.addf %51, %50 : vector<8x64xf32>
    %53 = vector.extract_strided_slice %40 {offsets = [1, 0, 0], sizes = [1, 8, 64], strides = [1, 1, 1]} : vector<4x16x64xf32> to vector<1x8x64xf32>
    %54 = vector.shape_cast %53 : vector<1x8x64xf32> to vector<8x64xf32>
    %55 = vector.extract_strided_slice %40 {offsets = [1, 8, 0], sizes = [1, 8, 64], strides = [1, 1, 1]} : vector<4x16x64xf32> to vector<1x8x64xf32>
    %56 = vector.shape_cast %55 : vector<1x8x64xf32> to vector<8x64xf32>
    %57 = arith.maximumf %54, %56 : vector<8x64xf32>
    %58 = arith.truncf %57 : vector<8x64xf32> to vector<8x64xbf16>
    %c1_44 = arith.constant 1 : index
    %c0_45 = arith.constant 0 : index
    %c0_46 = arith.constant 0 : index
    %59 = vector.load %arg6[%c1_44, %c0_45, %c0_46] : memref<4x64x64xbf16, #tpu.memory_space<vmem>>, vector<1x64x64xbf16>
    %60 = vector.shape_cast %59 : vector<1x64x64xbf16> to vector<64x64xbf16>
    %cst_47 = arith.constant dense<0.000000e+00> : vector<8x64xf32>
    %61 = tpu.matmul %58, %60, %cst_47 {dimension_numbers = #tpu.dot_dimension_numbers<[1], [0], [0], [1], [0, 0, 1, 1], [], []>} : vector<8x64xbf16>, vector<64x64xbf16>, vector<8x64xf32> -> vector<8x64xf32>
    %62 = arith.addf %52, %61 : vector<8x64xf32>
    %63 = vector.extract_strided_slice %40 {offsets = [2, 0, 0], sizes = [1, 8, 64], strides = [1, 1, 1]} : vector<4x16x64xf32> to vector<1x8x64xf32>
    %64 = vector.shape_cast %63 : vector<1x8x64xf32> to vector<8x64xf32>
    %65 = vector.extract_strided_slice %40 {offsets = [2, 8, 0], sizes = [1, 8, 64], strides = [1, 1, 1]} : vector<4x16x64xf32> to vector<1x8x64xf32>
    %66 = vector.shape_cast %65 : vector<1x8x64xf32> to vector<8x64xf32>
    %67 = arith.maximumf %64, %66 : vector<8x64xf32>
    %68 = arith.truncf %67 : vector<8x64xf32> to vector<8x64xbf16>
    %c2_48 = arith.constant 2 : index
    %c0_49 = arith.constant 0 : index
    %c0_50 = arith.constant 0 : index
    %69 = vector.load %arg6[%c2_48, %c0_49, %c0_50] : memref<4x64x64xbf16, #tpu.memory_space<vmem>>, vector<1x64x64xbf16>
    %70 = vector.shape_cast %69 : vector<1x64x64xbf16> to vector<64x64xbf16>
    %cst_51 = arith.constant dense<0.000000e+00> : vector<8x64xf32>
    %71 = tpu.matmul %68, %70, %cst_51 {dimension_numbers = #tpu.dot_dimension_numbers<[1], [0], [0], [1], [0, 0, 1, 1], [], []>} : vector<8x64xbf16>, vector<64x64xbf16>, vector<8x64xf32> -> vector<8x64xf32>
    %72 = arith.addf %62, %71 : vector<8x64xf32>
    %73 = vector.extract_strided_slice %40 {offsets = [3, 0, 0], sizes = [1, 8, 64], strides = [1, 1, 1]} : vector<4x16x64xf32> to vector<1x8x64xf32>
    %74 = vector.shape_cast %73 : vector<1x8x64xf32> to vector<8x64xf32>
    %75 = vector.extract_strided_slice %40 {offsets = [3, 8, 0], sizes = [1, 8, 64], strides = [1, 1, 1]} : vector<4x16x64xf32> to vector<1x8x64xf32>
    %76 = vector.shape_cast %75 : vector<1x8x64xf32> to vector<8x64xf32>
    %77 = arith.maximumf %74, %76 : vector<8x64xf32>
    %78 = arith.truncf %77 : vector<8x64xf32> to vector<8x64xbf16>
    %c3 = arith.constant 3 : index
    %c0_52 = arith.constant 0 : index
    %c0_53 = arith.constant 0 : index
    %79 = vector.load %arg6[%c3, %c0_52, %c0_53] : memref<4x64x64xbf16, #tpu.memory_space<vmem>>, vector<1x64x64xbf16>
    %80 = vector.shape_cast %79 : vector<1x64x64xbf16> to vector<64x64xbf16>
    %cst_54 = arith.constant dense<0.000000e+00> : vector<8x64xf32>
    %81 = tpu.matmul %78, %80, %cst_54 {dimension_numbers = #tpu.dot_dimension_numbers<[1], [0], [0], [1], [0, 0, 1, 1], [], []>} : vector<8x64xbf16>, vector<64x64xbf16>, vector<8x64xf32> -> vector<8x64xf32>
    %82 = arith.addf %72, %81 : vector<8x64xf32>
    %cst_55 = arith.constant 0.000000e+00 : f32
    %83 = vector.broadcast %cst_55 : f32 to vector<8x64xf32>
    %84 = arith.maximumf %82, %83 : vector<8x64xf32>
    %85 = arith.truncf %84 : vector<8x64xf32> to vector<8x64xbf16>
    %c0_56 = arith.constant 0 : index
    %c0_57 = arith.constant 0 : index
    %86 = vector.load %arg8[%c0_56, %c0_57] : memref<8x64xbf16, #tpu.memory_space<vmem>>, vector<8x64xbf16>
    %cst_58 = arith.constant dense<0.000000e+00> : vector<8x8xf32>
    %87 = tpu.matmul %86, %85, %cst_58 {dimension_numbers = #tpu.dot_dimension_numbers<[1], [1], [0], [0], [0, 0, 1, 0], [], []>} : vector<8x64xbf16>, vector<8x64xbf16>, vector<8x8xf32> -> vector<8x8xf32>
    %c0_59 = arith.constant 0 : index
    %c0_60 = arith.constant 0 : index
    %88 = vector.load %arg9[%c0_59, %c0_60] : memref<8x1xf32, #tpu.memory_space<vmem>>, vector<8x1xf32>
    %89 = vector.broadcast %88 : vector<8x1xf32> to vector<8x8xf32>
    %90 = arith.addf %87, %89 : vector<8x8xf32>
    %c0_61 = arith.constant 0 : index
    %c0_62 = arith.constant 0 : index
    %c0_63 = arith.constant 0 : index
    %91 = vector.load %arg10[%c0_61, %c0_62, %c0_63] : memref<1x8x8xf32, #tpu.memory_space<vmem>>, vector<1x8x8xf32>
    %92 = vector.shape_cast %91 : vector<1x8x8xf32> to vector<8x8xf32>
    %93 = vector.shape_cast %90 : vector<8x8xf32> to vector<1x8x8xf32>
    tpu.vector_store %arg10[%c0_61, %c0_62, %c0_63], %93 {strides = array<i32>} : memref<1x8x8xf32, #tpu.memory_space<vmem>>, vector<1x8x8xf32>,
    return
  }
  func.func @transform_0(%arg0: i32) -> (i32, i32, i32) {
    %c0_i32 = arith.constant 0 : i32
    %c0_i32_0 = arith.constant 0 : i32
    %c0_i32_1 = arith.constant 0 : i32
    return %arg0, %c0_i32, %c0_i32_0 : i32, i32, i32
  }
  func.func @transform_1(%arg0: i32) -> (i32, i32) {
    %c0_i32 = arith.constant 0 : i32
    %c0_i32_0 = arith.constant 0 : i32
    %c0_i32_1 = arith.constant 0 : i32
    return %c0_i32, %c0_i32_0 : i32, i32
  }
  func.func @transform_2(%arg0: i32) -> (i32, i32) {
    %c0_i32 = arith.constant 0 : i32
    %c0_i32_0 = arith.constant 0 : i32
    %c0_i32_1 = arith.constant 0 : i32
    return %c0_i32, %c0_i32_0 : i32, i32
  }
  func.func @transform_3(%arg0: i32) -> (i32, i32, i32) {
    %c0_i32 = arith.constant 0 : i32
    %c0_i32_0 = arith.constant 0 : i32
    %c0_i32_1 = arith.constant 0 : i32
    %c0_i32_2 = arith.constant 0 : i32
    return %c0_i32, %c0_i32_0, %c0_i32_1 : i32, i32, i32
  }
  func.func @transform_4(%arg0: i32) -> (i32, i32) {
    %c0_i32 = arith.constant 0 : i32
    %c0_i32_0 = arith.constant 0 : i32
    %c0_i32_1 = arith.constant 0 : i32
    return %c0_i32, %c0_i32_0 : i32, i32
  }
  func.func @transform_5(%arg0: i32) -> (i32, i32, i32) {
    %c0_i32 = arith.constant 0 : i32
    %c0_i32_0 = arith.constant 0 : i32
    %c0_i32_1 = arith.constant 0 : i32
    %c0_i32_2 = arith.constant 0 : i32
    return %c0_i32, %c0_i32_0, %c0_i32_1 : i32, i32, i32
  }
  func.func @transform_6(%arg0: i32) -> (i32, i32) {
    %c0_i32 = arith.constant 0 : i32
    %c0_i32_0 = arith.constant 0 : i32
    %c0_i32_1 = arith.constant 0 : i32
    return %c0_i32, %c0_i32_0 : i32, i32
  }
  func.func @transform_7(%arg0: i32) -> (i32, i32) {
    %c0_i32 = arith.constant 0 : i32
    %c0_i32_0 = arith.constant 0 : i32
    %c0_i32_1 = arith.constant 0 : i32
    return %c0_i32, %c0_i32_0 : i32, i32
  }
  func.func @transform_8(%arg0: i32) -> (i32, i32) {
    %c0_i32 = arith.constant 0 : i32
    %c0_i32_0 = arith.constant 0 : i32
    %c0_i32_1 = arith.constant 0 : i32
    return %c0_i32, %c0_i32_0 : i32, i32
  }
  func.func @transform_9(%arg0: i32) -> (i32, i32, i32) {
    %c0_i32 = arith.constant 0 : i32
    %c0_i32_0 = arith.constant 0 : i32
    %c0_i32_1 = arith.constant 0 : i32
    return %arg0, %c0_i32, %c0_i32_0 : i32, i32, i32
  }
}

</mosaic_0001>

<llo_original>
// kernel: tpu_custom_call.1
$region0: #{tpu_custom_call.1}
  #allocation0 [shape = 'u32[]', space=smem, size = 0x4, offset = 0x4, fixed_abs, tag = 'smem constant byte address 0x4 - core index']
  #allocation1 [shape = 'u32[72,128]{1,0:T(1,128)}', space=vmem, size = 0x9000, scoped, tag = 'internal scratch']
  #allocation2 [shape = 'bf16[10,8,32]{2,1,0:T(8,128)(2,1)}', space=vmem, size = 0x5000, scoped, tag = 'scratch operand']
  %s0 = inlined_call_operand.vmem [shape: bf16[1,128,12], index: 0, kind: input, shape index: {}]
  %s1 = inlined_call_operand.vmem [shape: bf16[12,32], index: 1, kind: input, shape index: {}]
  %s2 = inlined_call_operand.vmem [shape: f32[1,32], index: 2, kind: input, shape index: {}]
  %s3 = inlined_call_operand.vmem [shape: bf16[3,32,64], index: 3, kind: input, shape index: {}]
  %s4 = inlined_call_operand.vmem [shape: f32[1,64], index: 4, kind: input, shape index: {}]
  %s5 = inlined_call_operand.hbm [shape: bf16[4,64,64], index: 5, kind: input, shape index: {}]
  %s6 = inlined_call_operand.vmem [shape: f32[1,64], index: 6, kind: input, shape index: {}]
  %s7 = inlined_call_operand.vmem [shape: bf16[8,64], index: 7, kind: input, shape index: {}]
  %s8 = inlined_call_operand.vmem [shape: f32[8,1], index: 8, kind: input, shape index: {}]
  %s9 = inlined_call_operand.hbm [shape: f32[1,8,8], index: 9, kind: output, shape index: {}]
  %s10 = sld [smem:[#allocation0]]
  $region50: #{tpu_custom_call.1} parent=0
    _
  %s12 = ssub.s32 1, %s10
  %s13 = scalar_select 0, %s12, %s10
  $region1: #{tpu_custom_call.1} parent=0
    #allocation3 [shape = 'u8[65536]{0}', space=vmem, size = 0x10000, scoped, tag = 'input window, operand 5, single buffered']
    #allocation4 [shape = 's32[1]{0}', space=sflag, size = 0x4, scoped, tag = 'scoped memory for tpu_custom_call.1']
    #allocation5 [shape = 's32[1]{0}', space=sflag, size = 0x4, scoped, tag = 'scoped memory for tpu_custom_call.1']
    #allocation6 [shape = 'u8[4096]{0}', space=vmem, size = 0x1000, scoped, tag = 'output window, operand 0, single buffered']
    %14 = vsyncpa [#allocation4], 0
    %15 = vsyncpa [#allocation5], 0
    // Predicated region
    $region2: #{tpu_custom_call.1} parent=1 // pred_check
      _
    $region3: #{tpu_custom_call.1} parent=1 // pred_check_branch
      %17 = sbr.rel (0) target = $region5
    $region4: #{tpu_custom_call.1} parent=1 // pred_region
      _
    $region5: #{tpu_custom_call.1} parent=1 // pred_fallthru
      _
    // Predicated region
    $region6: #{tpu_custom_call.1} parent=1 // pred_check
      _
    $region7: #{tpu_custom_call.1} parent=1 // pred_check_branch
      %19 = sbr.rel (0) target = $region9
    $region8: #{tpu_custom_call.1} parent=1 // pred_region
      _
    $region9: #{tpu_custom_call.1} parent=1 // pred_fallthru
      _
    // Predicated region
    $region10: #{tpu_custom_call.1} parent=1 // pred_check
      _
    $region11: #{tpu_custom_call.1} parent=1 // pred_check_branch
      %21 = sbr.rel (0) target = $region13
    $region12: #{tpu_custom_call.1} parent=1 // pred_region
      _
    $region13: #{tpu_custom_call.1} parent=1 // pred_fallthru
      _
    // Predicated region
    $region14: #{tpu_custom_call.1} parent=1 // pred_check
      _
    $region15: #{tpu_custom_call.1} parent=1 // pred_check_branch
      %23 = sbr.rel (0) target = $region17
    $region16: #{tpu_custom_call.1} parent=1 // pred_region
      _
    $region17: #{tpu_custom_call.1} parent=1 // pred_fallthru
      _
    // Predicated region
    $region18: #{tpu_custom_call.1} parent=1 // pred_check
      _
    $region19: #{tpu_custom_call.1} parent=1 // pred_check_branch
      %25 = sbr.rel (0) target = $region21
    $region20: #{tpu_custom_call.1} parent=1 // pred_region
      _
    $region21: #{tpu_custom_call.1} parent=1 // pred_fallthru
      _
    // Predicated region
    $region22: #{tpu_custom_call.1} parent=1 // pred_check
      _
    $region23: #{tpu_custom_call.1} parent=1 // pred_check_branch
      %27 = sbr.rel (0) target = $region25
    $region24: #{tpu_custom_call.1} parent=1 // pred_region
      %29 = vsyncadd [#allocation4], 0
      %s30 = sshll.u32 %s5, 4
      %s31 = int_to_ptr.hbm [resolvable:$true] %s30
      %s32 = sshll.u32 [#allocation3], 4
      %s33 = int_to_ptr.vmem [resolvable:$true] %s32
      %38 = dma.hbm_to_vmem [thread:$0]  %s31, 2048, %s33, [#allocation4], 64, 64, 4
    $region25: #{tpu_custom_call.1} parent=1 // pred_fallthru
      _
    // Predicated region
    $region26: #{tpu_custom_call.1} parent=1 // pred_check
      _
    $region27: #{tpu_custom_call.1} parent=1 // pred_check_branch
      %40 = sbr.rel (0) target = $region29
    $region28: #{tpu_custom_call.1} parent=1 // pred_region
      _
    $region29: #{tpu_custom_call.1} parent=1 // pred_fallthru
      _
    // Predicated region
    $region30: #{tpu_custom_call.1} parent=1 // pred_check
      _
    $region31: #{tpu_custom_call.1} parent=1 // pred_check_branch
      %42 = sbr.rel (0) target = $region33
    $region32: #{tpu_custom_call.1} parent=1 // pred_region
      _
    $region33: #{tpu_custom_call.1} parent=1 // pred_fallthru
      _
    // Predicated region
    $region34: #{tpu_custom_call.1} parent=1 // pred_check
      _
    $region35: #{tpu_custom_call.1} parent=1 // pred_check_branch
      %44 = sbr.rel (0) target = $region37
    $region36: #{tpu_custom_call.1} parent=1 // pred_region
      _
    $region37: #{tpu_custom_call.1} parent=1 // pred_fallthru
      _
    // Predicated region
    $region38: #{tpu_custom_call.1} parent=1 // pred_check
      _
    $region39: #{tpu_custom_call.1} parent=1 // pred_check_branch
      %46 = sbr.rel (0) target = $region41
    $region40: #{tpu_custom_call.1} parent=1 // pred_region
      %48 = dma.done [#allocation4], 2048
    $region41: #{tpu_custom_call.1} parent=1 // pred_fallthru
      _
    %v50 = vld [vmem:[%s0] sm:$0xf]
    %v51 = vld [vmem:[%s0 + $0x4] sm:$0xf]
    %v52 = vld [vmem:[%s0 + $0x8] sm:$0xf]
    %v53 = vld [vmem:[%s0 + $0xc] sm:$0xf]
    %v54 = vld [vmem:[%s0 + $0x10] sm:$0xf]
    %v55 = vld [vmem:[%s0 + $0x14] sm:$0xf]
    %v56 = vld [vmem:[%s0 + $0x18] sm:$0xf]
    %v57 = vld [vmem:[%s0 + $0x1c] sm:$0xf]
    %v58 = vld [vmem:[%s0 + $0x20] sm:$0xf]
    %v59 = vld [vmem:[%s0 + $0x24] sm:$0xf]
    %v60 = vld [vmem:[%s0 + $0x28] sm:$0xf]
    %v61 = vld [vmem:[%s0 + $0x2c] sm:$0xf]
    %v62 = vld [vmem:[%s0 + $0x30] sm:$0xf]
    %v63 = vld [vmem:[%s0 + $0x34] sm:$0xf]
    %v64 = vld [vmem:[%s0 + $0x38] sm:$0xf]
    %v65 = vld [vmem:[%s0 + $0x3c] sm:$0xf]
    %v66 = vld [vmem:[%s1] sm:$0xf]
    %v67 = vld [vmem:[%s1 + $0x4] sm:$0x3]
    %v68 = vld [vmem:[%s2] sm:$0x1]
    %v70 = vperm.slane %v68, 0
    %v88 = vunpack.c.l.b16 %v50
    %v89 = vunpack.c.l.b16 %v51
    %v90 = vunpack.c.l.b16 %v52
    %v91 = vunpack.c.l.b16 %v53
    %v92 = vunpack.c.l.b16 %v54
    %v93 = vunpack.c.l.b16 %v55
    %v94 = vunpack.c.l.b16 %v56
    %v95 = vunpack.c.l.b16 %v57
    %v96 = vunpack.c.l.b16 %v58
    %v97 = vunpack.c.l.b16 %v59
    %v98 = vunpack.c.l.b16 %v60
    %v99 = vunpack.c.l.b16 %v61
    %v100 = vunpack.c.l.b16 %v62
    %v101 = vunpack.c.l.b16 %v63
    %v102 = vunpack.c.l.b16 %v64
    %v103 = vunpack.c.l.b16 %v65
    %v104 = vpack.c.b16 %v89, %v88
    %v105 = vpack.c.b16 %v91, %v90
    %v106 = vpack.c.b16 %v93, %v92
    %v107 = vpack.c.b16 %v95, %v94
    %v108 = vpack.c.b16 %v97, %v96
    %v109 = vpack.c.b16 %v99, %v98
    %v110 = vpack.c.b16 %v101, %v100
    %v111 = vpack.c.b16 %v103, %v102
    %v114 = vunpack.c.l.b16 %v66
    %v115 = vunpack.c.l.b16 %v67
    %v116 = vpack.c.b16 %v115, %v114
    %vm117 = vcmask 97280
    %v119 = vsel %vm117, %v104, 0
    %v122 = vsel %vm117, %v105, 0
    %v125 = vsel %vm117, %v106, 0
    %v128 = vsel %vm117, %v107, 0
    %v131 = vsel %vm117, %v108, 0
    %v134 = vsel %vm117, %v109, 0
    %v137 = vsel %vm117, %v110, 0
    %v140 = vsel %vm117, %v111, 0
    %vm142 = vcmask 1045504
    %v144 = vsel %vm142, %v116, 0
    %146 = vmatpush.bf16.msra.mxu0 0
    %147 = vmatpush.bf16.msra.mxu0 0
    %148 = vmatpush.bf16.msra.mxu0 0
    %149 = vmatpush.bf16.msra.mxu0 0
    %150 = vmatpush.bf16.msra.mxu0 0
    %151 = vmatpush.bf16.msra.mxu0 0
    %152 = vmatpush.bf16.msra.mxu0 0
    %153 = vmatpush.bf16.msra.mxu0 %v144
    %154 = vmatmul.bf16.gmra.mxu0 %v119
    %v155 = vpop.f32.mrf.mxu0
    %v156 = vadd.f32 %v70, %v155
    %v157 = vpop.f32.mrf.mxu0
    %v158 = vadd.f32 %v70, %v157
    %159 = vmatmul.bf16.gmra.mxu0 %v122
    %v160 = vpop.f32.mrf.mxu0
    %v161 = vadd.f32 %v70, %v160
    %v162 = vpop.f32.mrf.mxu0
    %v163 = vadd.f32 %v70, %v162
    %164 = vmatmul.bf16.gmra.mxu0 %v125
    %v165 = vpop.f32.mrf.mxu0
    %v166 = vadd.f32 %v70, %v165
    %v167 = vpop.f32.mrf.mxu0
    %v168 = vadd.f32 %v70, %v167
    %169 = vmatmul.bf16.gmra.mxu0 %v128
    %v170 = vpop.f32.mrf.mxu0
    %v171 = vadd.f32 %v70, %v170
    %v172 = vpop.f32.mrf.mxu0
    %v173 = vadd.f32 %v70, %v172
    %174 = vmatmul.bf16.gmra.mxu0 %v131
    %v175 = vpop.f32.mrf.mxu0
    %v176 = vadd.f32 %v70, %v175
    %v177 = vpop.f32.mrf.mxu0
    %v178 = vadd.f32 %v70, %v177
    %179 = vmatmul.bf16.gmra.mxu0 %v134
    %v180 = vpop.f32.mrf.mxu0
    %v181 = vadd.f32 %v70, %v180
    %v182 = vpop.f32.mrf.mxu0
    %v183 = vadd.f32 %v70, %v182
    %184 = vmatmul.bf16.gmra.mxu0 %v137
    %v185 = vpop.f32.mrf.mxu0
    %v186 = vadd.f32 %v70, %v185
    %v187 = vpop.f32.mrf.mxu0
    %v188 = vadd.f32 %v70, %v187
    %189 = vmatmul.bf16.gmra.mxu0 %v140
    %v190 = vpop.f32.mrf.mxu0
    %v191 = vadd.f32 %v70, %v190
    %v192 = vpop.f32.mrf.mxu0
    %v193 = vadd.f32 %v70, %v192
    %194 = vdwg.mxu0
    %v195 = vmax.f32 %v156, 0.0
    %v196 = vmax.f32 %v158, 0.0
    %v197 = vmax.f32 %v161, 0.0
    %v198 = vmax.f32 %v163, 0.0
    %v199 = vmax.f32 %v166, 0.0
    %v200 = vmax.f32 %v168, 0.0
    %v201 = vmax.f32 %v171, 0.0
    %v202 = vmax.f32 %v173, 0.0
    %v203 = vmax.f32 %v176, 0.0
    %v204 = vmax.f32 %v178, 0.0
    %v205 = vmax.f32 %v181, 0.0
    %v206 = vmax.f32 %v183, 0.0
    %v207 = vmax.f32 %v186, 0.0
    %v208 = vmax.f32 %v188, 0.0
    %v209 = vmax.f32 %v191, 0.0
    %v210 = vmax.f32 %v193, 0.0
    %v211 = vmax.f32 %v195, %v196
    %v212 = vmax.f32 %v197, %v198
    %v213 = vmax.f32 %v199, %v200
    %v214 = vmax.f32 %v201, %v202
    %v215 = vmax.f32 %v203, %v204
    %v216 = vmax.f32 %v205, %v206
    %v217 = vmax.f32 %v207, %v208
    %v218 = vmax.f32 %v209, %v210
    %v219 = vpack.c.bf16 %v211, %v211
    %v220 = vpack.c.bf16 %v212, %v212
    %v221 = vpack.c.bf16 %v213, %v213
    %v222 = vpack.c.bf16 %v214, %v214
    %v223 = vpack.c.bf16 %v215, %v215
    %v224 = vpack.c.bf16 %v216, %v216
    %v225 = vpack.c.bf16 %v217, %v217
    %v226 = vpack.c.bf16 %v218, %v218
    %vm227 = vcmask 257024
    %228 = vst.msk [vmem:[#allocation2] sm:$0xf] %vm227, 0
    %s229 = scalar_lea.vmem [#allocation2], 36
    %230 = vst.msk [vmem:[%s229] sm:$0xf] %vm227, 0
    %s231 = scalar_lea.vmem [#allocation2], 4
    %232 = vst.msk [vmem:[%s231] sm:$0xf] %vm227, %v219
    %233 = vst.msk [vmem:[%s231 + $0x4] sm:$0xf] %vm227, %v220
    %234 = vst.msk [vmem:[%s231 + $0x8] sm:$0xf] %vm227, %v221
    %235 = vst.msk [vmem:[%s231 + $0xc] sm:$0xf] %vm227, %v222
    %236 = vst.msk [vmem:[%s231 + $0x10] sm:$0xf] %vm227, %v223
    %237 = vst.msk [vmem:[%s231 + $0x14] sm:$0xf] %vm227, %v224
    %238 = vst.msk [vmem:[%s231 + $0x18] sm:$0xf] %vm227, %v225
    %239 = vst.msk [vmem:[%s231 + $0x1c] sm:$0xf] %vm227, %v226
    %v240 = vld [vmem:[%s4] sm:$0x1]
    %v241 = vld [vmem:[#allocation2] sm:$0xf]
    %v242 = vld [vmem:[#allocation2 + $0x4] sm:$0xf]
    %v243 = vld [vmem:[#allocation2 + $0x8] sm:$0xf]
    %v244 = vld [vmem:[#allocation2 + $0xc] sm:$0xf]
    %v245 = vld [vmem:[#allocation2 + $0x10] sm:$0xf]
    %v246 = vld [vmem:[#allocation2 + $0x14] sm:$0xf]
    %v247 = vld [vmem:[#allocation2 + $0x18] sm:$0xf]
    %v248 = vld [vmem:[#allocation2 + $0x1c] sm:$0xf]
    %v249 = vld [vmem:[%s3] sm:$0xf]
    %v250 = vld [vmem:[%s3 + $0x4] sm:$0xf]
    %v251 = vld [vmem:[%s3 + $0x8] sm:$0xf]
    %v252 = vld [vmem:[%s3 + $0xc] sm:$0xf]
    %v261 = vunpack.c.l.b16 %v241
    %v262 = vunpack.c.l.b16 %v242
    %v263 = vunpack.c.l.b16 %v243
    %v264 = vunpack.c.l.b16 %v244
    %v265 = vunpack.c.l.b16 %v245
    %v266 = vunpack.c.l.b16 %v246
    %v267 = vunpack.c.l.b16 %v247
    %v268 = vunpack.c.l.b16 %v248
    %v269 = vpack.c.b16 %v262, %v261
    %v270 = vpack.c.b16 %v264, %v263
    %v271 = vpack.c.b16 %v266, %v265
    %v272 = vpack.c.b16 %v268, %v267
    %v277 = vunpack.c.l.b16 %v249
    %v278 = vunpack.c.l.b16 %v250
    %v279 = vunpack.c.l.b16 %v251
    %v280 = vunpack.c.l.b16 %v252
    %v281 = vpack.c.b16 %v278, %v277
    %v282 = vpack.c.b16 %v280, %v279
    %vm285 = vcmask 261120
    %v287 = vsel %vm285, %v269, 0
    %v290 = vsel %vm285, %v270, 0
    %v293 = vsel %vm285, %v271, 0
    %v296 = vsel %vm285, %v272, 0
    %298 = vmatpush.bf16.msra.mxu0 0
    %299 = vmatpush.bf16.msra.mxu0 0
    %300 = vmatpush.bf16.msra.mxu0 0
    %301 = vmatpush.bf16.msra.mxu0 0
    %302 = vmatpush.bf16.msra.mxu0 0
    %303 = vmatpush.bf16.msra.mxu0 0
    %304 = vmatpush.bf16.msra.mxu0 %v282
    %305 = vmatpush.bf16.msra.mxu0 %v281
    %306 = vmatmul.bf16.gmra.mxu0 %v287
    %v307 = vpop.f32.mrf.mxu0
    %v308 = vadd.f32 0.0, %v307
    %v309 = vpop.f32.mrf.mxu0
    %v310 = vadd.f32 0.0, %v309
    %311 = vmatmul.bf16.gmra.mxu0 %v290
    %v312 = vpop.f32.mrf.mxu0
    %v313 = vadd.f32 0.0, %v312
    %v314 = vpop.f32.mrf.mxu0
    %v315 = vadd.f32 0.0, %v314
    %316 = vmatmul.bf16.gmra.mxu0 %v293
    %v317 = vpop.f32.mrf.mxu0
    %v318 = vadd.f32 0.0, %v317
    %v319 = vpop.f32.mrf.mxu0
    %v320 = vadd.f32 0.0, %v319
    %321 = vmatmul.bf16.gmra.mxu0 %v296
    %v322 = vpop.f32.mrf.mxu0
    %v323 = vadd.f32 0.0, %v322
    %v324 = vpop.f32.mrf.mxu0
    %v325 = vadd.f32 0.0, %v324
    %326 = vdwg.mxu0
    %v328 = vperm.slane %v240, 0
    %v330 = vadd.f32 %v328, %v308
    %v331 = vadd.f32 %v328, %v310
    %v332 = vadd.f32 %v328, %v313
    %v333 = vadd.f32 %v328, %v315
    %v334 = vadd.f32 %v328, %v318
    %v335 = vadd.f32 %v328, %v320
    %v336 = vadd.f32 %v328, %v323
    %v337 = vadd.f32 %v328, %v325
    %v338 = vld [vmem:[%s231] sm:$0xf]
    %v339 = vld [vmem:[%s231 + $0x4] sm:$0xf]
    %v340 = vld [vmem:[%s231 + $0x8] sm:$0xf]
    %v341 = vld [vmem:[%s231 + $0xc] sm:$0xf]
    %v342 = vld [vmem:[%s231 + $0x10] sm:$0xf]
    %v343 = vld [vmem:[%s231 + $0x14] sm:$0xf]
    %v344 = vld [vmem:[%s231 + $0x18] sm:$0xf]
    %v345 = vld [vmem:[%s231 + $0x1c] sm:$0xf]
    %s346 = scalar_lea.vmem %s3, 16
    %v347 = vld [vmem:[%s346] sm:$0xf]
    %v348 = vld [vmem:[%s346 + $0x4] sm:$0xf]
    %v349 = vld [vmem:[%s346 + $0x8] sm:$0xf]
    %v350 = vld [vmem:[%s346 + $0xc] sm:$0xf]
    %v359 = vunpack.c.l.b16 %v338
    %v360 = vunpack.c.l.b16 %v339
    %v361 = vunpack.c.l.b16 %v340
    %v362 = vunpack.c.l.b16 %v341
    %v363 = vunpack.c.l.b16 %v342
    %v364 = vunpack.c.l.b16 %v343
    %v365 = vunpack.c.l.b16 %v344
    %v366 = vunpack.c.l.b16 %v345
    %v367 = vpack.c.b16 %v360, %v359
    %v368 = vpack.c.b16 %v362, %v361
    %v369 = vpack.c.b16 %v364, %v363
    %v370 = vpack.c.b16 %v366, %v365
    %v375 = vunpack.c.l.b16 %v347
    %v376 = vunpack.c.l.b16 %v348
    %v377 = vunpack.c.l.b16 %v349
    %v378 = vunpack.c.l.b16 %v350
    %v379 = vpack.c.b16 %v376, %v375
    %v380 = vpack.c.b16 %v378, %v377
    %v384 = vsel %vm285, %v367, 0
    %v387 = vsel %vm285, %v368, 0
    %v390 = vsel %vm285, %v369, 0
    %v393 = vsel %vm285, %v370, 0
    %395 = vmatpush.bf16.msra.mxu0 0
    %396 = vmatpush.bf16.msra.mxu0 0
    %397 = vmatpush.bf16.msra.mxu0 0
    %398 = vmatpush.bf16.msra.mxu0 0
    %399 = vmatpush.bf16.msra.mxu0 0
    %400 = vmatpush.bf16.msra.mxu0 0
    %401 = vmatpush.bf16.msra.mxu0 %v380
    %402 = vmatpush.bf16.msra.mxu0 %v379
    %403 = vmatmul.bf16.gmra.mxu0 %v384
    %v404 = vpop.f32.mrf.mxu0
    %v405 = vadd.f32 0.0, %v404
    %v406 = vpop.f32.mrf.mxu0
    %v407 = vadd.f32 0.0, %v406
    %408 = vmatmul.bf16.gmra.mxu0 %v387
    %v409 = vpop.f32.mrf.mxu0
    %v410 = vadd.f32 0.0, %v409
    %v411 = vpop.f32.mrf.mxu0
    %v412 = vadd.f32 0.0, %v411
    %413 = vmatmul.bf16.gmra.mxu0 %v390
    %v414 = vpop.f32.mrf.mxu0
    %v415 = vadd.f32 0.0, %v414
    %v416 = vpop.f32.mrf.mxu0
    %v417 = vadd.f32 0.0, %v416
    %418 = vmatmul.bf16.gmra.mxu0 %v393
    %v419 = vpop.f32.mrf.mxu0
    %v420 = vadd.f32 0.0, %v419
    %v421 = vpop.f32.mrf.mxu0
    %v422 = vadd.f32 0.0, %v421
    %423 = vdwg.mxu0
    %v424 = vadd.f32 %v330, %v405
    %v425 = vadd.f32 %v331, %v407
    %v426 = vadd.f32 %v332, %v410
    %v427 = vadd.f32 %v333, %v412
    %v428 = vadd.f32 %v334, %v415
    %v429 = vadd.f32 %v335, %v417
    %v430 = vadd.f32 %v336, %v420
    %v431 = vadd.f32 %v337, %v422
    %s432 = scalar_lea.vmem [#allocation2], 8
    %v433 = vld [vmem:[%s432] sm:$0xf]
    %v434 = vld [vmem:[%s432 + $0x4] sm:$0xf]
    %v435 = vld [vmem:[%s432 + $0x8] sm:$0xf]
    %v436 = vld [vmem:[%s432 + $0xc] sm:$0xf]
    %v437 = vld [vmem:[%s432 + $0x10] sm:$0xf]
    %v438 = vld [vmem:[%s432 + $0x14] sm:$0xf]
    %v439 = vld [vmem:[%s432 + $0x18] sm:$0xf]
    %v440 = vld [vmem:[%s432 + $0x1c] sm:$0xf]
    %s441 = scalar_lea.vmem %s3, 32
    %v442 = vld [vmem:[%s441] sm:$0xf]
    %v443 = vld [vmem:[%s441 + $0x4] sm:$0xf]
    %v444 = vld [vmem:[%s441 + $0x8] sm:$0xf]
    %v445 = vld [vmem:[%s441 + $0xc] sm:$0xf]
    %v454 = vunpack.c.l.b16 %v433
    %v455 = vunpack.c.l.b16 %v434
    %v456 = vunpack.c.l.b16 %v435
    %v457 = vunpack.c.l.b16 %v436
    %v458 = vunpack.c.l.b16 %v437
    %v459 = vunpack.c.l.b16 %v438
    %v460 = vunpack.c.l.b16 %v439
    %v461 = vunpack.c.l.b16 %v440
    %v462 = vpack.c.b16 %v455, %v454
    %v463 = vpack.c.b16 %v457, %v456
    %v464 = vpack.c.b16 %v459, %v458
    %v465 = vpack.c.b16 %v461, %v460
    %v470 = vunpack.c.l.b16 %v442
    %v471 = vunpack.c.l.b16 %v443
    %v472 = vunpack.c.l.b16 %v444
    %v473 = vunpack.c.l.b16 %v445
    %v474 = vpack.c.b16 %v471, %v470
    %v475 = vpack.c.b16 %v473, %v472
    %v479 = vsel %vm285, %v462, 0
    %v482 = vsel %vm285, %v463, 0
    %v485 = vsel %vm285, %v464, 0
    %v488 = vsel %vm285, %v465, 0
    %490 = vmatpush.bf16.msra.mxu0 0
    %491 = vmatpush.bf16.msra.mxu0 0
    %492 = vmatpush.bf16.msra.mxu0 0
    %493 = vmatpush.bf16.msra.mxu0 0
    %494 = vmatpush.bf16.msra.mxu0 0
    %495 = vmatpush.bf16.msra.mxu0 0
    %496 = vmatpush.bf16.msra.mxu0 %v475
    %497 = vmatpush.bf16.msra.mxu0 %v474
    %498 = vmatmul.bf16.gmra.mxu0 %v479
    %v499 = vpop.f32.mrf.mxu0
    %v500 = vadd.f32 0.0, %v499
    %v501 = vpop.f32.mrf.mxu0
    %v502 = vadd.f32 0.0, %v501
    %503 = vmatmul.bf16.gmra.mxu0 %v482
    %v504 = vpop.f32.mrf.mxu0
    %v505 = vadd.f32 0.0, %v504
    %v506 = vpop.f32.mrf.mxu0
    %v507 = vadd.f32 0.0, %v506
    %508 = vmatmul.bf16.gmra.mxu0 %v485
    %v509 = vpop.f32.mrf.mxu0
    %v510 = vadd.f32 0.0, %v509
    %v511 = vpop.f32.mrf.mxu0
    %v512 = vadd.f32 0.0, %v511
    %513 = vmatmul.bf16.gmra.mxu0 %v488
    %v514 = vpop.f32.mrf.mxu0
    %v515 = vadd.f32 0.0, %v514
    %v516 = vpop.f32.mrf.mxu0
    %v517 = vadd.f32 0.0, %v516
    %518 = vdwg.mxu0
    %v519 = vadd.f32 %v424, %v500
    %v520 = vadd.f32 %v425, %v502
    %v521 = vadd.f32 %v426, %v505
    %v522 = vadd.f32 %v427, %v507
    %v523 = vadd.f32 %v428, %v510
    %v524 = vadd.f32 %v429, %v512
    %v525 = vadd.f32 %v430, %v515
    %v526 = vadd.f32 %v431, %v517
    %v527 = vmax.f32 %v519, 0.0
    %v528 = vmax.f32 %v520, 0.0
    %v529 = vmax.f32 %v521, 0.0
    %v530 = vmax.f32 %v522, 0.0
    %v531 = vmax.f32 %v523, 0.0
    %v532 = vmax.f32 %v524, 0.0
    %v533 = vmax.f32 %v525, 0.0
    %v534 = vmax.f32 %v526, 0.0
    %v535 = vld [vmem:[%s6] sm:$0x1]
    %v536 = vmax.f32 %v527, %v528
    %v537 = vpack.c.bf16 %v536, %v536
    %v538 = vld [vmem:[#allocation3] sm:$0xf]
    %v539 = vld [vmem:[#allocation3 + $0x4] sm:$0xf]
    %v540 = vld [vmem:[#allocation3 + $0x8] sm:$0xf]
    %v541 = vld [vmem:[#allocation3 + $0xc] sm:$0xf]
    %v542 = vld [vmem:[#allocation3 + $0x10] sm:$0xf]
    %v543 = vld [vmem:[#allocation3 + $0x14] sm:$0xf]
    %v544 = vld [vmem:[#allocation3 + $0x18] sm:$0xf]
    %v545 = vld [vmem:[#allocation3 + $0x1c] sm:$0xf]
    %v554 = vunpack.c.l.b16 %v538
    %v555 = vunpack.c.l.b16 %v539
    %v556 = vunpack.c.l.b16 %v540
    %v557 = vunpack.c.l.b16 %v541
    %v558 = vunpack.c.l.b16 %v542
    %v559 = vunpack.c.l.b16 %v543
    %v560 = vunpack.c.l.b16 %v544
    %v561 = vunpack.c.l.b16 %v545
    %v562 = vpack.c.b16 %v555, %v554
    %v563 = vpack.c.b16 %v557, %v556
    %v564 = vpack.c.b16 %v559, %v558
    %v565 = vpack.c.b16 %v561, %v560
    %vm570 = vcmask 523264
    %v572 = vsel %vm570, %v537, 0
    %574 = vmatpush.bf16.msra.mxu0 0
    %575 = vmatpush.bf16.msra.mxu0 0
    %576 = vmatpush.bf16.msra.mxu0 0
    %577 = vmatpush.bf16.msra.mxu0 0
    %578 = vmatpush.bf16.msra.mxu0 %v565
    %579 = vmatpush.bf16.msra.mxu0 %v564
    %580 = vmatpush.bf16.msra.mxu0 %v563
    %581 = vmatpush.bf16.msra.mxu0 %v562
    %582 = vmatmul.bf16.gmra.mxu0 %v572
    %v583 = vpop.f32.mrf.mxu0
    %v584 = vadd.f32 0.0, %v583
    %v585 = vpop.f32.mrf.mxu0
    %586 = vdwg.mxu0
    %v588 = vperm.slane %v535, 0
    %v590 = vadd.f32 %v588, %v584
    %v591 = vmax.f32 %v529, %v530
    %v592 = vpack.c.bf16 %v591, %v591
    %s593 = scalar_lea.vmem [#allocation3], 32
    %v594 = vld [vmem:[%s593] sm:$0xf]
    %v595 = vld [vmem:[%s593 + $0x4] sm:$0xf]
    %v596 = vld [vmem:[%s593 + $0x8] sm:$0xf]
    %v597 = vld [vmem:[%s593 + $0xc] sm:$0xf]
    %v598 = vld [vmem:[%s593 + $0x10] sm:$0xf]
    %v599 = vld [vmem:[%s593 + $0x14] sm:$0xf]
    %v600 = vld [vmem:[%s593 + $0x18] sm:$0xf]
    %v601 = vld [vmem:[%s593 + $0x1c] sm:$0xf]
    %v610 = vunpack.c.l.b16 %v594
    %v611 = vunpack.c.l.b16 %v595
    %v612 = vunpack.c.l.b16 %v596
    %v613 = vunpack.c.l.b16 %v597
    %v614 = vunpack.c.l.b16 %v598
    %v615 = vunpack.c.l.b16 %v599
    %v616 = vunpack.c.l.b16 %v600
    %v617 = vunpack.c.l.b16 %v601
    %v618 = vpack.c.b16 %v611, %v610
    %v619 = vpack.c.b16 %v613, %v612
    %v620 = vpack.c.b16 %v615, %v614
    %v621 = vpack.c.b16 %v617, %v616
    %v627 = vsel %vm570, %v592, 0
    %629 = vmatpush.bf16.msra.mxu0 0
    %630 = vmatpush.bf16.msra.mxu0 0
    %631 = vmatpush.bf16.msra.mxu0 0
    %632 = vmatpush.bf16.msra.mxu0 0
    %633 = vmatpush.bf16.msra.mxu0 %v621
    %634 = vmatpush.bf16.msra.mxu0 %v620
    %635 = vmatpush.bf16.msra.mxu0 %v619
    %636 = vmatpush.bf16.msra.mxu0 %v618
    %637 = vmatmul.bf16.gmra.mxu0 %v627
    %v638 = vpop.f32.mrf.mxu0
    %v639 = vadd.f32 0.0, %v638
    %v640 = vpop.f32.mrf.mxu0
    %641 = vdwg.mxu0
    %v642 = vadd.f32 %v590, %v639
    %v643 = vmax.f32 %v531, %v532
    %v644 = vpack.c.bf16 %v643, %v643
    %s645 = scalar_lea.vmem [#allocation3], 64
    %v646 = vld [vmem:[%s645] sm:$0xf]
    %v647 = vld [vmem:[%s645 + $0x4] sm:$0xf]
    %v648 = vld [vmem:[%s645 + $0x8] sm:$0xf]
    %v649 = vld [vmem:[%s645 + $0xc] sm:$0xf]
    %v650 = vld [vmem:[%s645 + $0x10] sm:$0xf]
    %v651 = vld [vmem:[%s645 + $0x14] sm:$0xf]
    %v652 = vld [vmem:[%s645 + $0x18] sm:$0xf]
    %v653 = vld [vmem:[%s645 + $0x1c] sm:$0xf]
    %v662 = vunpack.c.l.b16 %v646
    %v663 = vunpack.c.l.b16 %v647
    %v664 = vunpack.c.l.b16 %v648
    %v665 = vunpack.c.l.b16 %v649
    %v666 = vunpack.c.l.b16 %v650
    %v667 = vunpack.c.l.b16 %v651
    %v668 = vunpack.c.l.b16 %v652
    %v669 = vunpack.c.l.b16 %v653
    %v670 = vpack.c.b16 %v663, %v662
    %v671 = vpack.c.b16 %v665, %v664
    %v672 = vpack.c.b16 %v667, %v666
    %v673 = vpack.c.b16 %v669, %v668
    %v679 = vsel %vm570, %v644, 0
    %681 = vmatpush.bf16.msra.mxu0 0
    %682 = vmatpush.bf16.msra.mxu0 0
    %683 = vmatpush.bf16.msra.mxu0 0
    %684 = vmatpush.bf16.msra.mxu0 0
    %685 = vmatpush.bf16.msra.mxu0 %v673
    %686 = vmatpush.bf16.msra.mxu0 %v672
    %687 = vmatpush.bf16.msra.mxu0 %v671
    %688 = vmatpush.bf16.msra.mxu0 %v670
    %689 = vmatmul.bf16.gmra.mxu0 %v679
    %v690 = vpop.f32.mrf.mxu0
    %v691 = vadd.f32 0.0, %v690
    %v692 = vpop.f32.mrf.mxu0
    %693 = vdwg.mxu0
    %v694 = vadd.f32 %v642, %v691
    %v695 = vmax.f32 %v533, %v534
    %v696 = vpack.c.bf16 %v695, %v695
    %s697 = scalar_lea.vmem [#allocation3], 96
    %v698 = vld [vmem:[%s697] sm:$0xf]
    %v699 = vld [vmem:[%s697 + $0x4] sm:$0xf]
    %v700 = vld [vmem:[%s697 + $0x8] sm:$0xf]
    %v701 = vld [vmem:[%s697 + $0xc] sm:$0xf]
    %v702 = vld [vmem:[%s697 + $0x10] sm:$0xf]
    %v703 = vld [vmem:[%s697 + $0x14] sm:$0xf]
    %v704 = vld [vmem:[%s697 + $0x18] sm:$0xf]
    %v705 = vld [vmem:[%s697 + $0x1c] sm:$0xf]
    %v714 = vunpack.c.l.b16 %v698
    %v715 = vunpack.c.l.b16 %v699
    %v716 = vunpack.c.l.b16 %v700
    %v717 = vunpack.c.l.b16 %v701
    %v718 = vunpack.c.l.b16 %v702
    %v719 = vunpack.c.l.b16 %v703
    %v720 = vunpack.c.l.b16 %v704
    %v721 = vunpack.c.l.b16 %v705
    %v722 = vpack.c.b16 %v715, %v714
    %v723 = vpack.c.b16 %v717, %v716
    %v724 = vpack.c.b16 %v719, %v718
    %v725 = vpack.c.b16 %v721, %v720
    %v731 = vsel %vm570, %v696, 0
    %733 = vmatpush.bf16.msra.mxu0 0
    %734 = vmatpush.bf16.msra.mxu0 0
    %735 = vmatpush.bf16.msra.mxu0 0
    %736 = vmatpush.bf16.msra.mxu0 0
    %737 = vmatpush.bf16.msra.mxu0 %v725
    %738 = vmatpush.bf16.msra.mxu0 %v724
    %739 = vmatpush.bf16.msra.mxu0 %v723
    %740 = vmatpush.bf16.msra.mxu0 %v722
    %741 = vmatmul.bf16.gmra.mxu0 %v731
    %v742 = vpop.f32.mrf.mxu0
    %v743 = vadd.f32 0.0, %v742
    %v744 = vpop.f32.mrf.mxu0
    %745 = vdwg.mxu0
    %v746 = vadd.f32 %v694, %v743
    %v747 = vmax.f32 %v746, 0.0
    %v748 = vpack.c.bf16 %v747, %v747
    %v749 = vld [vmem:[%s7] sm:$0xf]
    %v750 = vld [vmem:[%s8] sm:$0xff]
    %752 = vset.pattern.permute.xlu0 0
    %753 = vperm.xlu0 %752, %v750
    %v754 = vpop.permute.xlu0 %753
    %v757 = vsel %vm570, %v749, 0
    %v760 = vsel %vm570, %v748, 0
    %762 = vmatpush.bf16.xpose.msra.mxu0 0
    %763 = vmatpush.bf16.xpose.msra.mxu0 0
    %764 = vmatpush.bf16.xpose.msra.mxu0 0
    %765 = vmatpush.bf16.xpose.msra.mxu0 0
    %766 = vmatpush.bf16.xpose.msra.mxu0 0
    %767 = vmatpush.bf16.xpose.msra.mxu0 0
    %768 = vmatpush.bf16.xpose.msra.mxu0 0
    %769 = vmatpush.bf16.xpose.msra.mxu0 %v760
    %770 = vmatmul.bf16.gmra.mxu0 %v757
    %v771 = vpop.f32.mrf.mxu0
    %v772 = vadd.f32 %v754, %v771
    %v773 = vpop.f32.mrf.mxu0
    %774 = vdwg.mxu0
    %vm775 = vcmask 64512
    %776 = vst.msk [vmem:[#allocation6] sm:$0xff] %vm775, %v772
    // Predicated region
    $region42: #{tpu_custom_call.1} parent=1 // pred_check
      _
    $region43: #{tpu_custom_call.1} parent=1 // pred_check_branch
      %778 = sbr.rel (0) target = $region45
    $region44: #{tpu_custom_call.1} parent=1 // pred_region
      %780 = vsyncadd [#allocation5], 0
      %s782 = sshll.u32 [#allocation6], 4
      %s783 = int_to_ptr.vmem [resolvable:$true] %s782
      %s784 = sshll.u32 %s9, 4
      %s785 = int_to_ptr.hbm [resolvable:$true] %s784
      %787 = dma.vmem_to_hbm [thread:$0]  %s783, 128, %s785, [#allocation5]
    $region45: #{tpu_custom_call.1} parent=1 // pred_fallthru
      _
    // Predicated region
    $region46: #{tpu_custom_call.1} parent=1 // pred_check
      _
    $region47: #{tpu_custom_call.1} parent=1 // pred_check_branch
      %789 = sbr.rel (0) target = $region49
    $region48: #{tpu_custom_call.1} parent=1 // pred_region
      %791 = dma.done [#allocation5], 128
    $region49: #{tpu_custom_call.1} parent=1 // pred_fallthru
      _
    %792 = vsyncpa [#allocation4], 1
    %793 = vsyncpa [#allocation5], 1

</llo_original>
